<compile_context>
chip_gen: v7x
topology: tpu7x:2x2x1
jax: 0.10.0
libtpu: 0.0.40
codegen_flags: <defaults>
</compile_context>

<pallas_src>
import numpy as np
import jax
import jax.numpy as jnp
from jax.experimental import pallas as pl
from jax.experimental.pallas import tpu as pltpu


def _round_up(x, m):
    return ((x + m - 1) // m) * m


def _default_num_steps(n_batch):
    """1 grid step on single-TC chips (v5e/v6e): collapse the grid and amortize the
    per-step overhead.  2 'parallel' steps on v7x so both TensorCores get work."""
    try:
        kind = jax.devices()[0].device_kind.lower()
    except Exception:
        kind = ""
    if "v7" in kind and n_batch % 2 == 0:
        return 2
    return 1


def _make_kernel(CP, H, W, F, KH, KW, P, G):
    """Fused conv+relu+pool kernel for one grid step handling G q-images and
    G a-images (M = 2*G images) in a single wide MXU matmul."""
    M = 2 * G
    H_out = H - KH + 1
    W_out = W - KW + 1
    PH, PW = H_out // P, W_out // P            # floor mode, like nn.MaxPool2d
    SEG = H * W                                 # lanes per image segment (256 here)
    L = (H_out - 1) * W + W_out                 # flat (row-major) conv span per image
    shifts = [kh * W + kw for kh in range(KH) for kw in range(KW)]
    WP = (M - 1) * SEG + L                      # wide conv width (all M images)
    WV = WP - (P - 1) * W                       # after vertical (row) pooling shifts
    WH = WV - (P - 1)                           # after horizontal (col) pooling shifts
    SPAN = P * (PH - 1) * W + P * (PW - 1) + 1  # per-image anchor span for selection

    # ---- correctness invariants (review concern: garbage lanes must never be
    # selected).  Conv lanes with flat column index >= W_out within a row are
    # row-wrap garbage, and lanes past an image's L span read into the next image's
    # 256-lane segment.  The pooling only ever *selects* anchor lanes
    # l = P*(ph*W + pw) whose shifted maxima read l + dh*W + dw (dh,dw < P); those
    # all satisfy row < H_out, col < W_out and stay inside the image's own segment.
    assert max(shifts) + L <= SEG                      # im2col stays in-segment
    assert P * PH <= H_out and P * PW <= W_out         # floor pooling bound
    assert (SPAN - 1) + (P - 1) * W + (P - 1) <= L - 1  # pooled reads are valid conv cols
    assert (M - 1) * SEG + SPAN <= WH                  # selection span inside hmax

    def kernel(q_ref, a_ref, w_ref, b_ref, s_ref, oq_ref, oa_ref):
        # q_ref/a_ref: (G, CP, SEG) f32   w_ref: (F, KH*KW*CP) bf16
        # b_ref: (F, 1) f32               s_ref: (SPAN, PH*PW) bf16 one-hot
        # oq_ref/oa_ref: (G*F, PH*PW) f32

        # 1) Lane-concatenate the M images of this step: image m lives in lanes
        #    [m*SEG, (m+1)*SEG) (SEG % 128 == 0 -> lane-group aligned, cheap).
        imgs = [q_ref[g] for g in range(G)] + [a_ref[g] for g in range(G)]
        x = jnp.concatenate(imgs, axis=1) if M > 1 else imgs[0]        # (CP, M*SEG) f32

        # 2) im2col: KH*KW lane-shifted slices stacked along sublanes.  Channels are
        #    zero-padded to CP (multiple of 8) in the wrapper, so every piece is a
        #    full (CP, WP) sublane group -- no sublane repack per tap.
        patches = jnp.concatenate([x[:, s:s + WP] for s in shifts], axis=0)  # (KH*KW*CP, WP)

        # 3) Conv2d (VALID, stride 1) for ALL images in ONE bf16 MXU matmul with f32
        #    accumulation, then bias + ReLU in f32 on the VPU (single broadcast).
        conv = jnp.dot(w_ref[...], patches.astype(jnp.bfloat16),
                       preferred_element_type=jnp.float32)             # (F, WP) f32
        conv = jnp.maximum(conv + b_ref[...], 0.0)

        # 4) MaxPool2d(P): shifted maxima over the wide flat lane domain (f32 VPU).
        v = conv[:, :WV]
        for dh in range(1, P):
            v = jnp.maximum(v, conv[:, dh * W:dh * W + WV])
        h = v[:, :WH]
        for dw in range(1, P):
            h = jnp.maximum(h, v[:, dw:dw + WH])

        # 5) Gather every image's PH*PW window anchors with ONE one-hot matmul:
        #    per-image spans stacked along sublanes -> (M*F, SPAN) @ (SPAN, PH*PW).
        #    sel is exactly one-hot and kept f32 for the matmul, so the gather is
        #    exact and the result is a lane-dense (M*F, PH*PW) slab.
        stk = jnp.concatenate(
            [h[:, m * SEG:m * SEG + SPAN] for m in range(M)], axis=0)   # (M*F, SPAN)
        pooled = jnp.dot(stk, s_ref[...].astype(jnp.float32),
                         preferred_element_type=jnp.float32)            # (M*F, PH*PW)

        oq_ref[...] = pooled[:G * F].astype(oq_ref.dtype)               # one store / stream
        oa_ref[...] = pooled[G * F:].astype(oa_ref.dtype)

    return kernel, (PH, PW, SPAN)


def conv_relu_pool_pallas(q_nchw, a_nchw, w_mat, bias_col, sel, KH, KW, P,
                          num_steps=1):
    """Fused conv+relu+maxpool applied to q and a in one pallas_call."""
    N, C, H, W = q_nchw.shape
    F = w_mat.shape[0]
    CP = w_mat.shape[1] // (KH * KW)            # channel count padded to multiple of 8
    assert num_steps >= 1 and N % num_steps == 0
    G = N // num_steps                           # batch items per grid step (per stream)
    kernel, (PH, PW, SPAN) = _make_kernel(CP, H, W, F, KH, KW, P, G)
    HW = H * W
    PHPW = PH * PW

    def prep(x):                                 # free reshape + tiny channel zero-pad
        x = x.reshape(N, C, HW)
        if CP != C:
            x = jnp.pad(x, ((0, 0), (0, CP - C), (0, 0)))
        return x

    q2, a2 = prep(q_nchw), prep(a_nchw)
    out_struct = jax.ShapeDtypeStruct((N * F, PHPW), q_nchw.dtype)

    oq, oa = pl.pallas_call(
        kernel,
        out_shape=(out_struct, out_struct),
        grid_spec=pltpu.PrefetchScalarGridSpec(
            num_scalar_prefetch=0,
            grid=(num_steps,),
            in_specs=[
                pl.BlockSpec((G, CP, HW), lambda s: (s, 0, 0)),          # q group
                pl.BlockSpec((G, CP, HW), lambda s: (s, 0, 0)),          # a group
                pl.BlockSpec((F, KH * KW * CP), lambda s: (0, 0)),       # weights (bf16)
                pl.BlockSpec((F, 1), lambda s: (0, 0)),                  # bias (f32)
                pl.BlockSpec((SPAN, PHPW), lambda s: (0, 0)),            # pool select (bf16)
            ],
            out_specs=[
                pl.BlockSpec((G * F, PHPW), lambda s: (s, 0)),
                pl.BlockSpec((G * F, PHPW), lambda s: (s, 0)),
            ],
        ),
        compiler_params=pltpu.CompilerParams(
            dimension_semantics=("parallel",)),
    )(q2, a2, w_mat, bias_col, sel)

    return oq.reshape(N, F, PH, PW), oa.reshape(N, F, PH, PW)


class CNNModulePallas:
    """Pallas port of qa_cnn.CNNModule: shared Conv2d -> ReLU -> MaxPool2d."""

    def __init__(self, feature_maps, filter_shape, pool_size, channels=1, key=None):
        if isinstance(filter_shape, int):
            filter_shape = (filter_shape, filter_shape)
        self.kh, self.kw = filter_shape
        self.pool_size = pool_size
        self.channels = channels
        self.channels_pad = _round_up(channels, 8)   # 8-sublane-aligned im2col pieces
        self.feature_maps = feature_maps

        key = jax.random.PRNGKey(0) if key is None else key
        wk, bk = jax.random.split(key)
        # Deterministic init mimicking PyTorch Conv2d default (uniform +/- 1/sqrt(fan_in)).
        fan_in = channels * self.kh * self.kw
        bound = 1.0 / np.sqrt(fan_in)
        self.weight = jax.random.uniform(                   # HWIO, f32 (reference copy)
            wk, (self.kh, self.kw, channels, feature_maps), jnp.float32, -bound, bound)
        self.bias = jax.random.uniform(
            bk, (feature_maps,), jnp.float32, -bound, bound)

        # Pre-flattened, channel-padded, bf16 matmul weight: (F, KH*KW*CP), rows
        # ordered (kh, kw, c_pad) to match the in-kernel patch stacking.  Cast to
        # bf16 once here; accumulation stays f32 in the kernel.
        w_pad = jnp.pad(self.weight,
                        ((0, 0), (0, 0), (0, self.channels_pad - channels), (0, 0)))
        self.w_mat = jnp.transpose(
            w_pad.reshape(self.kh * self.kw * self.channels_pad, feature_maps)
        ).astype(jnp.bfloat16)
        self.bias_col = self.bias.reshape(feature_maps, 1)   # f32
        self._sel_cache = {}

    def _selection_matrix(self, H, W):
        """One-hot (SPAN, PH*PW) bf16 matrix picking the pooled window anchors of a
        single image (one-hot values are exact in bf16; promoted to f32 in-kernel)."""
        cache_key = (H, W)
        if cache_key not in self._sel_cache:
            P = self.pool_size
            H_out = H - self.kh + 1
            W_out = W - self.kw + 1
            PH, PW = H_out // P, W_out // P
            span = P * (PH - 1) * W + P * (PW - 1) + 1
            sel = np.zeros((span, PH * PW), np.float32)
            for ph in range(PH):
                for pw in range(PW):
                    sel[P * ph * W + P * pw, ph * PW + pw] = 1.0
            self._sel_cache[cache_key] = jnp.asarray(sel, dtype=jnp.bfloat16)
        return self._sel_cache[cache_key]

    def __call__(self, q_nchw, a_nchw):
        N, _, H, W = q_nchw.shape
        sel = self._selection_matrix(H, W)
        steps = _default_num_steps(N)
        return conv_relu_pool_pallas(q_nchw, a_nchw, self.w_mat, self.bias_col, sel,
                                     self.kh, self.kw, self.pool_size,
                                     num_steps=steps)


def _reference(x_nchw, w_hwio, bias, pool_size):
    """Plain-JAX f32 reference (conv + relu + maxpool) for correctness checking."""
    w_oihw = jnp.transpose(w_hwio, (3, 2, 0, 1))
    y = jax.lax.conv_general_dilated(
        x_nchw, w_oihw, window_strides=(1, 1), padding="VALID",
        dimension_numbers=("NCHW", "OIHW", "NCHW"))
    y = y + bias.reshape(1, -1, 1, 1)
    y = jnp.maximum(y, 0.0)
    y = jax.lax.reduce_window(
        y, -jnp.inf, jax.lax.max,
        window_dimensions=(1, 1, pool_size, pool_size),
        window_strides=(1, 1, pool_size, pool_size),
        padding="VALID")
    return y


if __name__ == "__main__":
    key = jax.random.PRNGKey(0)
    kq, ka, kp = jax.random.split(key, 3)

    # Small shapes consistent with the module's forward:
    #   q_input / a_input: (batch=2, channels=4, H=16, W=16)
    #   feature_maps=8, filter_shape=3, pool_size=2
    N, C, H, W = 2, 4, 16, 16
    feature_maps, filter_shape, pool_size = 8, 3, 2

    q_input = jax.random.normal(kq, (N, C, H, W), jnp.float32)
    a_input = jax.random.normal(ka, (N, C, H, W), jnp.float32)

    module = CNNModulePallas(feature_maps, filter_shape, pool_size,
                             channels=C, key=kp)
    q_out, a_out = module(q_input, a_input)
    (q_out, a_out) = jax.block_until_ready((q_out, a_out))

    # Correctness check against the plain-JAX f32 reference.  The conv matmul now
    # uses bf16 MXU operands (f32 accumulation), so the tolerance is a bit looser
    # than a pure-f32 path; values are O(1) so 2e-2 is comfortably above the
    # expected bf16 rounding error for K_eff = 36.
    q_ref = _reference(q_input, module.weight, module.bias, pool_size)
    a_ref = _reference(a_input, module.weight, module.bias, pool_size)
    PH = (H - filter_shape + 1) // pool_size
    assert q_out.shape == (N, feature_maps, PH, PH)
    assert a_out.shape == (N, feature_maps, PH, PH)
    assert np.allclose(np.asarray(q_out), np.asarray(q_ref), atol=2e-2, rtol=2e-2)
    assert np.allclose(np.asarray(a_out), np.asarray(a_ref), atol=2e-2, rtol=2e-2)

    print("KERNEL_OK")
</pallas_src>

<mosaic_0001>
module attributes {stable_mosaic.version = 11 : i64} {
  func.func @kernel(%arg0: i32, %arg1: memref<2x8x256xf32, #tpu.memory_space<vmem>>, %arg2: memref<2x8x256xf32, #tpu.memory_space<vmem>>, %arg3: memref<8x72xbf16, #tpu.memory_space<vmem>>, %arg4: memref<8x1xf32, #tpu.memory_space<vmem>>, %arg5: memref<205x49xbf16, #tpu.memory_space<vmem>>, %arg6: memref<16x49xf32, #tpu.memory_space<vmem>>, %arg7: memref<16x49xf32, #tpu.memory_space<vmem>>) attributes {dimension_semantics = [#tpu.dimension_semantics<parallel>], iteration_bounds = array<i64: 1>, scalar_prefetch = 0 : i64, scratch_operands = 0 : i64, tpu.core_type = #tpu.core_type<tc>, window_params = [{transform_indices = @transform_0, window_bounds = array<i64: 2, 8, 256>}, {transform_indices = @transform_1, window_bounds = array<i64: 2, 8, 256>}, {pipeline_mode = #tpu.pipeline_mode<synchronous>, transform_indices = @transform_2, window_bounds = array<i64: 8, 72>}, {pipeline_mode = #tpu.pipeline_mode<synchronous>, transform_indices = @transform_3, window_bounds = array<i64: 8, 1>}, {pipeline_mode = #tpu.pipeline_mode<synchronous>, transform_indices = @transform_4, window_bounds = array<i64: 205, 49>}, {transform_indices = @transform_5, window_bounds = array<i64: 16, 49>}, {transform_indices = @transform_6, window_bounds = array<i64: 16, 49>}]} {
    %c0 = arith.constant 0 : index
    %c0_0 = arith.constant 0 : index
    %c0_1 = arith.constant 0 : index
    %0 = vector.load %arg1[%c0, %c0_0, %c0_1] : memref<2x8x256xf32, #tpu.memory_space<vmem>>, vector<1x8x256xf32>
    %1 = vector.shape_cast %0 : vector<1x8x256xf32> to vector<8x256xf32>
    %c1 = arith.constant 1 : index
    %c0_2 = arith.constant 0 : index
    %c0_3 = arith.constant 0 : index
    %2 = vector.load %arg1[%c1, %c0_2, %c0_3] : memref<2x8x256xf32, #tpu.memory_space<vmem>>, vector<1x8x256xf32>
    %3 = vector.shape_cast %2 : vector<1x8x256xf32> to vector<8x256xf32>
    %c0_4 = arith.constant 0 : index
    %c0_5 = arith.constant 0 : index
    %c0_6 = arith.constant 0 : index
    %4 = vector.load %arg2[%c0_4, %c0_5, %c0_6] : memref<2x8x256xf32, #tpu.memory_space<vmem>>, vector<1x8x256xf32>
    %5 = vector.shape_cast %4 : vector<1x8x256xf32> to vector<8x256xf32>
    %c1_7 = arith.constant 1 : index
    %c0_8 = arith.constant 0 : index
    %c0_9 = arith.constant 0 : index
    %6 = vector.load %arg2[%c1_7, %c0_8, %c0_9] : memref<2x8x256xf32, #tpu.memory_space<vmem>>, vector<1x8x256xf32>
    %7 = vector.shape_cast %6 : vector<1x8x256xf32> to vector<8x256xf32>
    %8 = tpu.concatenate %1, %3, %5, %7 in 1 : vector<8x256xf32>, vector<8x256xf32>, vector<8x256xf32>, vector<8x256xf32> -> vector<8x1024xf32>
    %9 = vector.extract_strided_slice %8 {offsets = [0, 0], sizes = [8, 990], strides = [1, 1]} : vector<8x1024xf32> to vector<8x990xf32>
    %10 = vector.extract_strided_slice %8 {offsets = [0, 1], sizes = [8, 990], strides = [1, 1]} : vector<8x1024xf32> to vector<8x990xf32>
    %11 = vector.extract_strided_slice %8 {offsets = [0, 2], sizes = [8, 990], strides = [1, 1]} : vector<8x1024xf32> to vector<8x990xf32>
    %12 = vector.extract_strided_slice %8 {offsets = [0, 16], sizes = [8, 990], strides = [1, 1]} : vector<8x1024xf32> to vector<8x990xf32>
    %13 = vector.extract_strided_slice %8 {offsets = [0, 17], sizes = [8, 990], strides = [1, 1]} : vector<8x1024xf32> to vector<8x990xf32>
    %14 = vector.extract_strided_slice %8 {offsets = [0, 18], sizes = [8, 990], strides = [1, 1]} : vector<8x1024xf32> to vector<8x990xf32>
    %15 = vector.extract_strided_slice %8 {offsets = [0, 32], sizes = [8, 990], strides = [1, 1]} : vector<8x1024xf32> to vector<8x990xf32>
    %16 = vector.extract_strided_slice %8 {offsets = [0, 33], sizes = [8, 990], strides = [1, 1]} : vector<8x1024xf32> to vector<8x990xf32>
    %17 = vector.extract_strided_slice %8 {offsets = [0, 34], sizes = [8, 990], strides = [1, 1]} : vector<8x1024xf32> to vector<8x990xf32>
    %18 = tpu.concatenate %9, %10, %11, %12, %13, %14, %15, %16, %17 in 0 : vector<8x990xf32>, vector<8x990xf32>, vector<8x990xf32>, vector<8x990xf32>, vector<8x990xf32>, vector<8x990xf32>, vector<8x990xf32>, vector<8x990xf32>, vector<8x990xf32> -> vector<72x990xf32>
    %c0_10 = arith.constant 0 : index
    %c0_11 = arith.constant 0 : index
    %19 = vector.load %arg3[%c0_10, %c0_11] : memref<8x72xbf16, #tpu.memory_space<vmem>>, vector<8x72xbf16>
    %20 = arith.truncf %18 : vector<72x990xf32> to vector<72x990xbf16>
    %cst = arith.constant dense<0.000000e+00> : vector<8x990xf32>
    %21 = tpu.matmul %19, %20, %cst {dimension_numbers = #tpu.dot_dimension_numbers<[1], [0], [0], [1], [0, 0, 1, 1], [], []>} : vector<8x72xbf16>, vector<72x990xbf16>, vector<8x990xf32> -> vector<8x990xf32>
    %c0_12 = arith.constant 0 : index
    %c0_13 = arith.constant 0 : index
    %22 = vector.load %arg4[%c0_12, %c0_13] : memref<8x1xf32, #tpu.memory_space<vmem>>, vector<8x1xf32>
    %23 = vector.broadcast %22 : vector<8x1xf32> to vector<8x990xf32>
    %24 = arith.addf %21, %23 : vector<8x990xf32>
    %cst_14 = arith.constant 0.000000e+00 : f32
    %25 = vector.broadcast %cst_14 : f32 to vector<8x990xf32>
    %26 = arith.maximumf %24, %25 : vector<8x990xf32>
    %27 = vector.extract_strided_slice %26 {offsets = [0, 0], sizes = [8, 974], strides = [1, 1]} : vector<8x990xf32> to vector<8x974xf32>
    %28 = vector.extract_strided_slice %26 {offsets = [0, 16], sizes = [8, 974], strides = [1, 1]} : vector<8x990xf32> to vector<8x974xf32>
    %29 = arith.maximumf %27, %28 : vector<8x974xf32>
    %30 = vector.extract_strided_slice %29 {offsets = [0, 0], sizes = [8, 973], strides = [1, 1]} : vector<8x974xf32> to vector<8x973xf32>
    %31 = vector.extract_strided_slice %29 {offsets = [0, 1], sizes = [8, 973], strides = [1, 1]} : vector<8x974xf32> to vector<8x973xf32>
    %32 = arith.maximumf %30, %31 : vector<8x973xf32>
    %33 = vector.extract_strided_slice %32 {offsets = [0, 0], sizes = [8, 205], strides = [1, 1]} : vector<8x973xf32> to vector<8x205xf32>
    %34 = vector.extract_strided_slice %32 {offsets = [0, 256], sizes = [8, 205], strides = [1, 1]} : vector<8x973xf32> to vector<8x205xf32>
    %35 = vector.extract_strided_slice %32 {offsets = [0, 512], sizes = [8, 205], strides = [1, 1]} : vector<8x973xf32> to vector<8x205xf32>
    %36 = vector.extract_strided_slice %32 {offsets = [0, 768], sizes = [8, 205], strides = [1, 1]} : vector<8x973xf32> to vector<8x205xf32>
    %37 = tpu.concatenate %33, %34, %35, %36 in 0 : vector<8x205xf32>, vector<8x205xf32>, vector<8x205xf32>, vector<8x205xf32> -> vector<32x205xf32>
    %c0_15 = arith.constant 0 : index
    %c0_16 = arith.constant 0 : index
    %38 = vector.load %arg5[%c0_15, %c0_16] : memref<205x49xbf16, #tpu.memory_space<vmem>>, vector<205x49xbf16>
    %39 = arith.extf %38 : vector<205x49xbf16> to vector<205x49xf32>
    %cst_17 = arith.constant dense<0.000000e+00> : vector<32x49xf32>
    %40 = tpu.matmul %37, %39, %cst_17 {dimension_numbers = #tpu.dot_dimension_numbers<[1], [0], [0], [1], [0, 0, 1, 1], [], []>} : vector<32x205xf32>, vector<205x49xf32>, vector<32x49xf32> -> vector<32x49xf32>
    %41 = vector.extract_strided_slice %40 {offsets = [0, 0], sizes = [16, 49], strides = [1, 1]} : vector<32x49xf32> to vector<16x49xf32>
    %c0_18 = arith.constant 0 : index
    %c0_19 = arith.constant 0 : index
    %42 = vector.load %arg6[%c0_18, %c0_19] : memref<16x49xf32, #tpu.memory_space<vmem>>, vector<16x49xf32>
    tpu.vector_store %arg6[%c0_18, %c0_19], %41 {strides = array<i32>} : memref<16x49xf32, #tpu.memory_space<vmem>>, vector<16x49xf32>,
    %43 = vector.extract_strided_slice %40 {offsets = [16, 0], sizes = [16, 49], strides = [1, 1]} : vector<32x49xf32> to vector<16x49xf32>
    %c0_20 = arith.constant 0 : index
    %c0_21 = arith.constant 0 : index
    %44 = vector.load %arg7[%c0_20, %c0_21] : memref<16x49xf32, #tpu.memory_space<vmem>>, vector<16x49xf32>
    tpu.vector_store %arg7[%c0_20, %c0_21], %43 {strides = array<i32>} : memref<16x49xf32, #tpu.memory_space<vmem>>, vector<16x49xf32>,
    return
  }
  func.func @transform_0(%arg0: i32) -> (i32, i32, i32) {
    %c0_i32 = arith.constant 0 : i32
    %c0_i32_0 = arith.constant 0 : i32
    %c0_i32_1 = arith.constant 0 : i32
    return %arg0, %c0_i32, %c0_i32_0 : i32, i32, i32
  }
  func.func @transform_1(%arg0: i32) -> (i32, i32, i32) {
    %c0_i32 = arith.constant 0 : i32
    %c0_i32_0 = arith.constant 0 : i32
    %c0_i32_1 = arith.constant 0 : i32
    return %arg0, %c0_i32, %c0_i32_0 : i32, i32, i32
  }
  func.func @transform_2(%arg0: i32) -> (i32, i32) {
    %c0_i32 = arith.constant 0 : i32
    %c0_i32_0 = arith.constant 0 : i32
    %c0_i32_1 = arith.constant 0 : i32
    return %c0_i32, %c0_i32_0 : i32, i32
  }
  func.func @transform_3(%arg0: i32) -> (i32, i32) {
    %c0_i32 = arith.constant 0 : i32
    %c0_i32_0 = arith.constant 0 : i32
    %c0_i32_1 = arith.constant 0 : i32
    return %c0_i32, %c0_i32_0 : i32, i32
  }
  func.func @transform_4(%arg0: i32) -> (i32, i32) {
    %c0_i32 = arith.constant 0 : i32
    %c0_i32_0 = arith.constant 0 : i32
    %c0_i32_1 = arith.constant 0 : i32
    return %c0_i32, %c0_i32_0 : i32, i32
  }
  func.func @transform_5(%arg0: i32) -> (i32, i32) {
    %c0_i32 = arith.constant 0 : i32
    %c0_i32_0 = arith.constant 0 : i32
    return %arg0, %c0_i32 : i32, i32
  }
  func.func @transform_6(%arg0: i32) -> (i32, i32) {
    %c0_i32 = arith.constant 0 : i32
    %c0_i32_0 = arith.constant 0 : i32
    return %arg0, %c0_i32 : i32, i32
  }
}

</mosaic_0001>

<llo_original>
// kernel: tpu_custom_call.1
$region0: #{tpu_custom_call.1}
  #allocation0 [shape = 'u32[]', space=smem, size = 0x4, offset = 0x4, fixed_abs, tag = 'smem constant byte address 0x4 - core index']
  #allocation1 [shape = 'u32[144,128]{1,0:T(1,128)}', space=vmem, size = 0x12000, scoped, tag = 'internal scratch']
  %s0 = inlined_call_operand.vmem [shape: f32[2,8,256], index: 0, kind: input, shape index: {}]
  %s1 = inlined_call_operand.vmem [shape: f32[2,8,256], index: 1, kind: input, shape index: {}]
  %s2 = inlined_call_operand.vmem [shape: bf16[8,72], index: 2, kind: input, shape index: {}]
  %s3 = inlined_call_operand.vmem [shape: f32[8,1], index: 3, kind: input, shape index: {}]
  %s4 = inlined_call_operand.vmem [shape: bf16[205,49], index: 4, kind: input, shape index: {}]
  %s5 = inlined_call_operand.hbm [shape: f32[16,49], index: 5, kind: output, shape index: {0}]
  %s6 = inlined_call_operand.hbm [shape: f32[16,49], index: 6, kind: output, shape index: {1}]
  %7 = xla_tuple %s5, %s6
  %s8 = sld [smem:[#allocation0]]
  $region38: #{tpu_custom_call.1} parent=0
    _
  %s10 = ssub.s32 1, %s8
  %s11 = scalar_select 0, %s10, %s8
  $region1: #{tpu_custom_call.1} parent=0
    #allocation2 [shape = 'u8[8192]{0}', space=vmem, size = 0x2000, scoped, tag = 'output window, operand 0, single buffered']
    #allocation3 [shape = 's32[1]{0}', space=sflag, size = 0x4, scoped, tag = 'scoped memory for tpu_custom_call.1']
    #allocation4 [shape = 'u8[8192]{0}', space=vmem, size = 0x2000, scoped, tag = 'output window, operand 1, single buffered']
    #allocation5 [shape = 's32[1]{0}', space=sflag, size = 0x4, scoped, tag = 'scoped memory for tpu_custom_call.1']
    %12 = vsyncpa [#allocation3], 0
    %13 = vsyncpa [#allocation5], 0
    // Predicated region
    $region2: #{tpu_custom_call.1} parent=1 // pred_check
      _
    $region3: #{tpu_custom_call.1} parent=1 // pred_check_branch
      %15 = sbr.rel (0) target = $region5
    $region4: #{tpu_custom_call.1} parent=1 // pred_region
      _
    $region5: #{tpu_custom_call.1} parent=1 // pred_fallthru
      _
    // Predicated region
    $region6: #{tpu_custom_call.1} parent=1 // pred_check
      _
    $region7: #{tpu_custom_call.1} parent=1 // pred_check_branch
      %17 = sbr.rel (0) target = $region9
    $region8: #{tpu_custom_call.1} parent=1 // pred_region
      _
    $region9: #{tpu_custom_call.1} parent=1 // pred_fallthru
      _
    // Predicated region
    $region10: #{tpu_custom_call.1} parent=1 // pred_check
      _
    $region11: #{tpu_custom_call.1} parent=1 // pred_check_branch
      %19 = sbr.rel (0) target = $region13
    $region12: #{tpu_custom_call.1} parent=1 // pred_region
      _
    $region13: #{tpu_custom_call.1} parent=1 // pred_fallthru
      _
    // Predicated region
    $region14: #{tpu_custom_call.1} parent=1 // pred_check
      _
    $region15: #{tpu_custom_call.1} parent=1 // pred_check_branch
      %21 = sbr.rel (0) target = $region17
    $region16: #{tpu_custom_call.1} parent=1 // pred_region
      _
    $region17: #{tpu_custom_call.1} parent=1 // pred_fallthru
      _
    // Predicated region
    $region18: #{tpu_custom_call.1} parent=1 // pred_check
      _
    $region19: #{tpu_custom_call.1} parent=1 // pred_check_branch
      %23 = sbr.rel (0) target = $region21
    $region20: #{tpu_custom_call.1} parent=1 // pred_region
      _
    $region21: #{tpu_custom_call.1} parent=1 // pred_fallthru
      _
    %v25 = vld [vmem:[%s0] sm:$0xff]
    %v26 = vld [vmem:[%s0 + $0x8] sm:$0xff]
    %s27 = scalar_lea.vmem %s0, 16
    %v28 = vld [vmem:[%s27] sm:$0xff]
    %v29 = vld [vmem:[%s27 + $0x8] sm:$0xff]
    %v30 = vld [vmem:[%s1] sm:$0xff]
    %v31 = vld [vmem:[%s1 + $0x8] sm:$0xff]
    %s32 = scalar_lea.vmem %s1, 16
    %v33 = vld [vmem:[%s32] sm:$0xff]
    %v34 = vld [vmem:[%s32 + $0x8] sm:$0xff]
    %43 = vrot.lane.b32.xlu0 %v25, 127
    %v44 = vpop.permute.xlu0 %43
    %45 = vrot.lane.b32.xlu0 %v26, 127
    %v46 = vpop.permute.xlu0 %45
    %47 = vrot.lane.b32.xlu0 %v28, 127
    %v48 = vpop.permute.xlu0 %47
    %49 = vrot.lane.b32.xlu0 %v29, 127
    %v50 = vpop.permute.xlu0 %49
    %51 = vrot.lane.b32.xlu0 %v30, 127
    %v52 = vpop.permute.xlu0 %51
    %53 = vrot.lane.b32.xlu0 %v31, 127
    %v54 = vpop.permute.xlu0 %53
    %55 = vrot.lane.b32.xlu0 %v33, 127
    %v56 = vpop.permute.xlu0 %55
    %57 = vrot.lane.b32.xlu0 %v34, 127
    %v58 = vpop.permute.xlu0 %57
    %vm59 = vcmask 1039360
    %v60 = vsel %vm59, %v44, %v46
    %v61 = vsel %vm59, %v46, %v48
    %v62 = vsel %vm59, %v48, %v50
    %v63 = vsel %vm59, %v50, %v52
    %v64 = vsel %vm59, %v52, %v54
    %v65 = vsel %vm59, %v54, %v56
    %v66 = vsel %vm59, %v56, %v58
    %75 = vrot.lane.b32.xlu0 %v25, 126
    %v76 = vpop.permute.xlu0 %75
    %77 = vrot.lane.b32.xlu0 %v26, 126
    %v78 = vpop.permute.xlu0 %77
    %79 = vrot.lane.b32.xlu0 %v28, 126
    %v80 = vpop.permute.xlu0 %79
    %81 = vrot.lane.b32.xlu0 %v29, 126
    %v82 = vpop.permute.xlu0 %81
    %83 = vrot.lane.b32.xlu0 %v30, 126
    %v84 = vpop.permute.xlu0 %83
    %85 = vrot.lane.b32.xlu0 %v31, 126
    %v86 = vpop.permute.xlu0 %85
    %87 = vrot.lane.b32.xlu0 %v33, 126
    %v88 = vpop.permute.xlu0 %87
    %89 = vrot.lane.b32.xlu0 %v34, 126
    %v90 = vpop.permute.xlu0 %89
    %vm91 = vcmask 1031168
    %v92 = vsel %vm91, %v76, %v78
    %v93 = vsel %vm91, %v78, %v80
    %v94 = vsel %vm91, %v80, %v82
    %v95 = vsel %vm91, %v82, %v84
    %v96 = vsel %vm91, %v84, %v86
    %v97 = vsel %vm91, %v86, %v88
    %v98 = vsel %vm91, %v88, %v90
    %107 = vrot.lane.b32.xlu0 %v25, 112
    %v108 = vpop.permute.xlu0 %107
    %109 = vrot.lane.b32.xlu0 %v26, 112
    %v110 = vpop.permute.xlu0 %109
    %111 = vrot.lane.b32.xlu0 %v28, 112
    %v112 = vpop.permute.xlu0 %111
    %113 = vrot.lane.b32.xlu0 %v29, 112
    %v114 = vpop.permute.xlu0 %113
    %115 = vrot.lane.b32.xlu0 %v30, 112
    %v116 = vpop.permute.xlu0 %115
    %117 = vrot.lane.b32.xlu0 %v31, 112
    %v118 = vpop.permute.xlu0 %117
    %119 = vrot.lane.b32.xlu0 %v33, 112
    %v120 = vpop.permute.xlu0 %119
    %121 = vrot.lane.b32.xlu0 %v34, 112
    %v122 = vpop.permute.xlu0 %121
    %vm123 = vcmask 916480
    %v124 = vsel %vm123, %v108, %v110
    %v125 = vsel %vm123, %v110, %v112
    %v126 = vsel %vm123, %v112, %v114
    %v127 = vsel %vm123, %v114, %v116
    %v128 = vsel %vm123, %v116, %v118
    %v129 = vsel %vm123, %v118, %v120
    %v130 = vsel %vm123, %v120, %v122
    %139 = vrot.lane.b32.xlu0 %v25, 111
    %v140 = vpop.permute.xlu0 %139
    %141 = vrot.lane.b32.xlu0 %v26, 111
    %v142 = vpop.permute.xlu0 %141
    %143 = vrot.lane.b32.xlu0 %v28, 111
    %v144 = vpop.permute.xlu0 %143
    %145 = vrot.lane.b32.xlu0 %v29, 111
    %v146 = vpop.permute.xlu0 %145
    %147 = vrot.lane.b32.xlu0 %v30, 111
    %v148 = vpop.permute.xlu0 %147
    %149 = vrot.lane.b32.xlu0 %v31, 111
    %v150 = vpop.permute.xlu0 %149
    %151 = vrot.lane.b32.xlu0 %v33, 111
    %v152 = vpop.permute.xlu0 %151
    %153 = vrot.lane.b32.xlu0 %v34, 111
    %v154 = vpop.permute.xlu0 %153
    %vm155 = vcmask 908288
    %v156 = vsel %vm155, %v140, %v142
    %v157 = vsel %vm155, %v142, %v144
    %v158 = vsel %vm155, %v144, %v146
    %v159 = vsel %vm155, %v146, %v148
    %v160 = vsel %vm155, %v148, %v150
    %v161 = vsel %vm155, %v150, %v152
    %v162 = vsel %vm155, %v152, %v154
    %171 = vrot.lane.b32.xlu0 %v25, 110
    %v172 = vpop.permute.xlu0 %171
    %173 = vrot.lane.b32.xlu0 %v26, 110
    %v174 = vpop.permute.xlu0 %173
    %175 = vrot.lane.b32.xlu0 %v28, 110
    %v176 = vpop.permute.xlu0 %175
    %177 = vrot.lane.b32.xlu0 %v29, 110
    %v178 = vpop.permute.xlu0 %177
    %179 = vrot.lane.b32.xlu0 %v30, 110
    %v180 = vpop.permute.xlu0 %179
    %181 = vrot.lane.b32.xlu0 %v31, 110
    %v182 = vpop.permute.xlu0 %181
    %183 = vrot.lane.b32.xlu0 %v33, 110
    %v184 = vpop.permute.xlu0 %183
    %185 = vrot.lane.b32.xlu0 %v34, 110
    %v186 = vpop.permute.xlu0 %185
    %vm187 = vcmask 900096
    %v188 = vsel %vm187, %v172, %v174
    %v189 = vsel %vm187, %v174, %v176
    %v190 = vsel %vm187, %v176, %v178
    %v191 = vsel %vm187, %v178, %v180
    %v192 = vsel %vm187, %v180, %v182
    %v193 = vsel %vm187, %v182, %v184
    %v194 = vsel %vm187, %v184, %v186
    %203 = vrot.lane.b32.xlu0 %v25, 96
    %v204 = vpop.permute.xlu0 %203
    %205 = vrot.lane.b32.xlu0 %v26, 96
    %v206 = vpop.permute.xlu0 %205
    %207 = vrot.lane.b32.xlu0 %v28, 96
    %v208 = vpop.permute.xlu0 %207
    %209 = vrot.lane.b32.xlu0 %v29, 96
    %v210 = vpop.permute.xlu0 %209
    %211 = vrot.lane.b32.xlu0 %v30, 96
    %v212 = vpop.permute.xlu0 %211
    %213 = vrot.lane.b32.xlu0 %v31, 96
    %v214 = vpop.permute.xlu0 %213
    %215 = vrot.lane.b32.xlu0 %v33, 96
    %v216 = vpop.permute.xlu0 %215
    %217 = vrot.lane.b32.xlu0 %v34, 96
    %v218 = vpop.permute.xlu0 %217
    %vm219 = vcmask 785408
    %v220 = vsel %vm219, %v204, %v206
    %v221 = vsel %vm219, %v206, %v208
    %v222 = vsel %vm219, %v208, %v210
    %v223 = vsel %vm219, %v210, %v212
    %v224 = vsel %vm219, %v212, %v214
    %v225 = vsel %vm219, %v214, %v216
    %v226 = vsel %vm219, %v216, %v218
    %235 = vrot.lane.b32.xlu0 %v25, 95
    %v236 = vpop.permute.xlu0 %235
    %237 = vrot.lane.b32.xlu0 %v26, 95
    %v238 = vpop.permute.xlu0 %237
    %239 = vrot.lane.b32.xlu0 %v28, 95
    %v240 = vpop.permute.xlu0 %239
    %241 = vrot.lane.b32.xlu0 %v29, 95
    %v242 = vpop.permute.xlu0 %241
    %243 = vrot.lane.b32.xlu0 %v30, 95
    %v244 = vpop.permute.xlu0 %243
    %245 = vrot.lane.b32.xlu0 %v31, 95
    %v246 = vpop.permute.xlu0 %245
    %247 = vrot.lane.b32.xlu0 %v33, 95
    %v248 = vpop.permute.xlu0 %247
    %249 = vrot.lane.b32.xlu0 %v34, 95
    %v250 = vpop.permute.xlu0 %249
    %vm251 = vcmask 777216
    %v252 = vsel %vm251, %v236, %v238
    %v253 = vsel %vm251, %v238, %v240
    %v254 = vsel %vm251, %v240, %v242
    %v255 = vsel %vm251, %v242, %v244
    %v256 = vsel %vm251, %v244, %v246
    %v257 = vsel %vm251, %v246, %v248
    %v258 = vsel %vm251, %v248, %v250
    %267 = vrot.lane.b32.xlu0 %v25, 94
    %v268 = vpop.permute.xlu0 %267
    %269 = vrot.lane.b32.xlu0 %v26, 94
    %v270 = vpop.permute.xlu0 %269
    %271 = vrot.lane.b32.xlu0 %v28, 94
    %v272 = vpop.permute.xlu0 %271
    %273 = vrot.lane.b32.xlu0 %v29, 94
    %v274 = vpop.permute.xlu0 %273
    %275 = vrot.lane.b32.xlu0 %v30, 94
    %v276 = vpop.permute.xlu0 %275
    %277 = vrot.lane.b32.xlu0 %v31, 94
    %v278 = vpop.permute.xlu0 %277
    %279 = vrot.lane.b32.xlu0 %v33, 94
    %v280 = vpop.permute.xlu0 %279
    %281 = vrot.lane.b32.xlu0 %v34, 94
    %v282 = vpop.permute.xlu0 %281
    %vm283 = vcmask 769024
    %v284 = vsel %vm283, %v268, %v270
    %v285 = vsel %vm283, %v270, %v272
    %v286 = vsel %vm283, %v272, %v274
    %v287 = vsel %vm283, %v274, %v276
    %v288 = vsel %vm283, %v276, %v278
    %v289 = vsel %vm283, %v278, %v280
    %v290 = vsel %vm283, %v280, %v282
    %v299 = vld [vmem:[%s2] sm:$0xf]
    %v300 = vpack.c.bf16 %v60, %v25
    %v301 = vpack.c.bf16 %v61, %v26
    %v302 = vpack.c.bf16 %v62, %v28
    %v303 = vpack.c.bf16 %v63, %v29
    %v304 = vpack.c.bf16 %v64, %v30
    %v305 = vpack.c.bf16 %v65, %v31
    %v306 = vpack.c.bf16 %v66, %v33
    %v307 = vpack.c.bf16 %v58, %v34
    %v308 = vpack.c.bf16 %v124, %v92
    %v309 = vpack.c.bf16 %v125, %v93
    %v310 = vpack.c.bf16 %v126, %v94
    %v311 = vpack.c.bf16 %v127, %v95
    %v312 = vpack.c.bf16 %v128, %v96
    %v313 = vpack.c.bf16 %v129, %v97
    %v314 = vpack.c.bf16 %v130, %v98
    %v315 = vpack.c.bf16 %v122, %v90
    %v316 = vpack.c.bf16 %v188, %v156
    %v317 = vpack.c.bf16 %v189, %v157
    %v318 = vpack.c.bf16 %v190, %v158
    %v319 = vpack.c.bf16 %v191, %v159
    %v320 = vpack.c.bf16 %v192, %v160
    %v321 = vpack.c.bf16 %v193, %v161
    %v322 = vpack.c.bf16 %v194, %v162
    %v323 = vpack.c.bf16 %v186, %v154
    %v324 = vpack.c.bf16 %v252, %v220
    %v325 = vpack.c.bf16 %v253, %v221
    %v326 = vpack.c.bf16 %v254, %v222
    %v327 = vpack.c.bf16 %v255, %v223
    %v328 = vpack.c.bf16 %v256, %v224
    %v329 = vpack.c.bf16 %v257, %v225
    %v330 = vpack.c.bf16 %v258, %v226
    %v331 = vpack.c.bf16 %v250, %v218
    %v332 = vpack.c.bf16 %v284, %v284
    %v333 = vpack.c.bf16 %v285, %v285
    %v334 = vpack.c.bf16 %v286, %v286
    %v335 = vpack.c.bf16 %v287, %v287
    %v336 = vpack.c.bf16 %v288, %v288
    %v337 = vpack.c.bf16 %v289, %v289
    %v338 = vpack.c.bf16 %v290, %v290
    %v339 = vpack.c.bf16 %v282, %v282
    %v340 = vld [vmem:[%s3] sm:$0xff]
    %342 = vset.pattern.permute.xlu0 0
    %343 = vperm.xlu0 %342, %v340
    %v344 = vpop.permute.xlu0 %343
    %vm346 = vcmask 588800
    %v348 = vsel %vm346, %v299, 0
    %vm350 = vcmask 1043456
    %v352 = vsel %vm350, %v332, 0
    %v355 = vsel %vm350, %v333, 0
    %v358 = vsel %vm350, %v334, 0
    %v361 = vsel %vm350, %v335, 0
    %v364 = vsel %vm350, %v336, 0
    %v367 = vsel %vm350, %v337, 0
    %v370 = vsel %vm350, %v338, 0
    %v373 = vsel %vm350, %v339, 0
    %375 = vmatprep.subr.bf16.mxu0 %v301
    %376 = vmatpush1.bf16.msra.mxu0 %v300
    %377 = vmatprep.subr.bf16.mxu0 %v309
    %378 = vmatpush1.bf16.msra.mxu0 %v308
    %379 = vmatprep.subr.bf16.mxu0 %v317
    %380 = vmatpush1.bf16.msra.mxu0 %v316
    %381 = vmatprep.subr.bf16.mxu0 %v325
    %382 = vmatpush1.bf16.msra.mxu0 %v324
    %383 = vmatprep.subr.bf16.mxu0 %v355
    %384 = vmatpush1.bf16.msra.mxu0 %v352
    %385 = vmatprep.subr.bf16.mxu0 0
    %386 = vmatpush1.bf16.msra.mxu0 0
    %387 = vmatprep.subr.bf16.mxu0 0
    %388 = vmatpush1.bf16.msra.mxu0 0
    %389 = vmatprep.subr.bf16.mxu0 0
    %390 = vmatpush1.bf16.msra.mxu0 0
    %391 = vmatprep.subr.bf16.mxu0 0
    %392 = vmatpush1.bf16.msra.mxu0 0
    %393 = vmatprep.subr.bf16.mxu0 0
    %394 = vmatpush1.bf16.msra.mxu0 0
    %395 = vmatprep.subr.bf16.mxu0 0
    %396 = vmatpush1.bf16.msra.mxu0 0
    %397 = vmatprep.subr.bf16.mxu0 0
    %398 = vmatpush1.bf16.msra.mxu0 0
    %399 = vmatprep.subr.bf16.mxu0 0
    %400 = vmatpush1.bf16.msra.mxu0 0
    %401 = vmatprep.subr.bf16.mxu0 0
    %402 = vmatpush1.bf16.msra.mxu0 0
    %403 = vmatprep.subr.bf16.mxu0 0
    %404 = vmatpush1.bf16.msra.mxu0 0
    %405 = vmatprep.subr.bf16.mxu0 0
    %406 = vmatpush1.bf16.msra.mxu0 0
    %407 = vmatprep.mubr.bf16.mxu0 0
    %408 = vmatmul.mubr.bf16.gmra.mrb[0].mxu0 %v348
    %v409 = vpop.f32.mrb[0].mxu0
    %v410 = vadd.f32 %v344, %v409
    %v411 = vpop.f32.mrb[0].mxu0
    %v412 = vadd.f32 %v344, %v411
    %v413 = vpop.f32.mrb[0].mxu0
    %v414 = vpop.f32.mrb[0].mxu0
    %415 = vdwg.mxu0
    %416 = vmatprep.subr.bf16.mxu0 %v303
    %417 = vmatpush1.bf16.msra.mxu0 %v302
    %418 = vmatprep.subr.bf16.mxu0 %v311
    %419 = vmatpush1.bf16.msra.mxu0 %v310
    %420 = vmatprep.subr.bf16.mxu0 %v319
    %421 = vmatpush1.bf16.msra.mxu0 %v318
    %422 = vmatprep.subr.bf16.mxu0 %v327
    %423 = vmatpush1.bf16.msra.mxu0 %v326
    %424 = vmatprep.subr.bf16.mxu0 %v361
    %425 = vmatpush1.bf16.msra.mxu0 %v358
    %426 = vmatprep.subr.bf16.mxu0 0
    %427 = vmatpush1.bf16.msra.mxu0 0
    %428 = vmatprep.subr.bf16.mxu0 0
    %429 = vmatpush1.bf16.msra.mxu0 0
    %430 = vmatprep.subr.bf16.mxu0 0
    %431 = vmatpush1.bf16.msra.mxu0 0
    %432 = vmatprep.subr.bf16.mxu0 0
    %433 = vmatpush1.bf16.msra.mxu0 0
    %434 = vmatprep.subr.bf16.mxu0 0
    %435 = vmatpush1.bf16.msra.mxu0 0
    %436 = vmatprep.subr.bf16.mxu0 0
    %437 = vmatpush1.bf16.msra.mxu0 0
    %438 = vmatprep.subr.bf16.mxu0 0
    %439 = vmatpush1.bf16.msra.mxu0 0
    %440 = vmatprep.subr.bf16.mxu0 0
    %441 = vmatpush1.bf16.msra.mxu0 0
    %442 = vmatprep.subr.bf16.mxu0 0
    %443 = vmatpush1.bf16.msra.mxu0 0
    %444 = vmatprep.subr.bf16.mxu0 0
    %445 = vmatpush1.bf16.msra.mxu0 0
    %446 = vmatprep.subr.bf16.mxu0 0
    %447 = vmatpush1.bf16.msra.mxu0 0
    %448 = vmatprep.mubr.bf16.mxu0 0
    %449 = vmatmul.mubr.bf16.gmra.mrb[0].mxu0 %v348
    %v450 = vpop.f32.mrb[0].mxu0
    %v451 = vadd.f32 %v344, %v450
    %v452 = vpop.f32.mrb[0].mxu0
    %v453 = vadd.f32 %v344, %v452
    %v454 = vpop.f32.mrb[0].mxu0
    %v455 = vpop.f32.mrb[0].mxu0
    %456 = vdwg.mxu0
    %457 = vmatprep.subr.bf16.mxu0 %v305
    %458 = vmatpush1.bf16.msra.mxu0 %v304
    %459 = vmatprep.subr.bf16.mxu0 %v313
    %460 = vmatpush1.bf16.msra.mxu0 %v312
    %461 = vmatprep.subr.bf16.mxu0 %v321
    %462 = vmatpush1.bf16.msra.mxu0 %v320
    %463 = vmatprep.subr.bf16.mxu0 %v329
    %464 = vmatpush1.bf16.msra.mxu0 %v328
    %465 = vmatprep.subr.bf16.mxu0 %v367
    %466 = vmatpush1.bf16.msra.mxu0 %v364
    %467 = vmatprep.subr.bf16.mxu0 0
    %468 = vmatpush1.bf16.msra.mxu0 0
    %469 = vmatprep.subr.bf16.mxu0 0
    %470 = vmatpush1.bf16.msra.mxu0 0
    %471 = vmatprep.subr.bf16.mxu0 0
    %472 = vmatpush1.bf16.msra.mxu0 0
    %473 = vmatprep.subr.bf16.mxu0 0
    %474 = vmatpush1.bf16.msra.mxu0 0
    %475 = vmatprep.subr.bf16.mxu0 0
    %476 = vmatpush1.bf16.msra.mxu0 0
    %477 = vmatprep.subr.bf16.mxu0 0
    %478 = vmatpush1.bf16.msra.mxu0 0
    %479 = vmatprep.subr.bf16.mxu0 0
    %480 = vmatpush1.bf16.msra.mxu0 0
    %481 = vmatprep.subr.bf16.mxu0 0
    %482 = vmatpush1.bf16.msra.mxu0 0
    %483 = vmatprep.subr.bf16.mxu0 0
    %484 = vmatpush1.bf16.msra.mxu0 0
    %485 = vmatprep.subr.bf16.mxu0 0
    %486 = vmatpush1.bf16.msra.mxu0 0
    %487 = vmatprep.subr.bf16.mxu0 0
    %488 = vmatpush1.bf16.msra.mxu0 0
    %489 = vmatprep.mubr.bf16.mxu0 0
    %490 = vmatmul.mubr.bf16.gmra.mrb[0].mxu0 %v348
    %v491 = vpop.f32.mrb[0].mxu0
    %v492 = vadd.f32 %v344, %v491
    %v493 = vpop.f32.mrb[0].mxu0
    %v494 = vadd.f32 %v344, %v493
    %v495 = vpop.f32.mrb[0].mxu0
    %v496 = vpop.f32.mrb[0].mxu0
    %497 = vdwg.mxu0
    %498 = vmatprep.subr.bf16.mxu0 %v307
    %499 = vmatpush1.bf16.msra.mxu0 %v306
    %500 = vmatprep.subr.bf16.mxu0 %v315
    %501 = vmatpush1.bf16.msra.mxu0 %v314
    %502 = vmatprep.subr.bf16.mxu0 %v323
    %503 = vmatpush1.bf16.msra.mxu0 %v322
    %504 = vmatprep.subr.bf16.mxu0 %v331
    %505 = vmatpush1.bf16.msra.mxu0 %v330
    %506 = vmatprep.subr.bf16.mxu0 %v373
    %507 = vmatpush1.bf16.msra.mxu0 %v370
    %508 = vmatprep.subr.bf16.mxu0 0
    %509 = vmatpush1.bf16.msra.mxu0 0
    %510 = vmatprep.subr.bf16.mxu0 0
    %511 = vmatpush1.bf16.msra.mxu0 0
    %512 = vmatprep.subr.bf16.mxu0 0
    %513 = vmatpush1.bf16.msra.mxu0 0
    %514 = vmatprep.subr.bf16.mxu0 0
    %515 = vmatpush1.bf16.msra.mxu0 0
    %516 = vmatprep.subr.bf16.mxu0 0
    %517 = vmatpush1.bf16.msra.mxu0 0
    %518 = vmatprep.subr.bf16.mxu0 0
    %519 = vmatpush1.bf16.msra.mxu0 0
    %520 = vmatprep.subr.bf16.mxu0 0
    %521 = vmatpush1.bf16.msra.mxu0 0
    %522 = vmatprep.subr.bf16.mxu0 0
    %523 = vmatpush1.bf16.msra.mxu0 0
    %524 = vmatprep.subr.bf16.mxu0 0
    %525 = vmatpush1.bf16.msra.mxu0 0
    %526 = vmatprep.subr.bf16.mxu0 0
    %527 = vmatpush1.bf16.msra.mxu0 0
    %528 = vmatprep.subr.bf16.mxu0 0
    %529 = vmatpush1.bf16.msra.mxu0 0
    %530 = vmatprep.mubr.bf16.mxu0 0
    %531 = vmatmul.mubr.bf16.gmra.mrb[0].mxu0 %v348
    %v532 = vpop.f32.mrb[0].mxu0
    %v533 = vadd.f32 %v344, %v532
    %v534 = vpop.f32.mrb[0].mxu0
    %v535 = vadd.f32 %v344, %v534
    %v536 = vpop.f32.mrb[0].mxu0
    %v537 = vpop.f32.mrb[0].mxu0
    %538 = vdwg.mxu0
    %v539 = vmax.f32 %v410, 0.0
    %v540 = vmax.f32 %v412, 0.0
    %v541 = vmax.f32 %v451, 0.0
    %v542 = vmax.f32 %v453, 0.0
    %v543 = vmax.f32 %v492, 0.0
    %v544 = vmax.f32 %v494, 0.0
    %v545 = vmax.f32 %v533, 0.0
    %v546 = vmax.f32 %v535, 0.0
    %555 = vrot.lane.b32.xlu0 %v539, 112
    %v556 = vpop.permute.xlu0 %555
    %557 = vrot.lane.b32.xlu0 %v540, 112
    %v558 = vpop.permute.xlu0 %557
    %559 = vrot.lane.b32.xlu0 %v541, 112
    %v560 = vpop.permute.xlu0 %559
    %561 = vrot.lane.b32.xlu0 %v542, 112
    %v562 = vpop.permute.xlu0 %561
    %563 = vrot.lane.b32.xlu0 %v543, 112
    %v564 = vpop.permute.xlu0 %563
    %565 = vrot.lane.b32.xlu0 %v544, 112
    %v566 = vpop.permute.xlu0 %565
    %567 = vrot.lane.b32.xlu0 %v545, 112
    %v568 = vpop.permute.xlu0 %567
    %569 = vrot.lane.b32.xlu0 %v546, 112
    %v570 = vpop.permute.xlu0 %569
    %v571 = vsel %vm123, %v556, %v558
    %v572 = vsel %vm123, %v558, %v560
    %v573 = vsel %vm123, %v560, %v562
    %v574 = vsel %vm123, %v562, %v564
    %v575 = vsel %vm123, %v564, %v566
    %v576 = vsel %vm123, %v566, %v568
    %v577 = vsel %vm123, %v568, %v570
    %v586 = vmax.f32 %v539, %v571
    %v587 = vmax.f32 %v540, %v572
    %v588 = vmax.f32 %v541, %v573
    %v589 = vmax.f32 %v542, %v574
    %v590 = vmax.f32 %v543, %v575
    %v591 = vmax.f32 %v544, %v576
    %v592 = vmax.f32 %v545, %v577
    %v593 = vmax.f32 %v546, %v570
    %602 = vrot.lane.b32.xlu0 %v586, 127
    %v603 = vpop.permute.xlu0 %602
    %604 = vrot.lane.b32.xlu0 %v587, 127
    %v605 = vpop.permute.xlu0 %604
    %606 = vrot.lane.b32.xlu0 %v588, 127
    %v607 = vpop.permute.xlu0 %606
    %608 = vrot.lane.b32.xlu0 %v589, 127
    %v609 = vpop.permute.xlu0 %608
    %610 = vrot.lane.b32.xlu0 %v590, 127
    %v611 = vpop.permute.xlu0 %610
    %612 = vrot.lane.b32.xlu0 %v591, 127
    %v613 = vpop.permute.xlu0 %612
    %614 = vrot.lane.b32.xlu0 %v592, 127
    %v615 = vpop.permute.xlu0 %614
    %616 = vrot.lane.b32.xlu0 %v593, 127
    %v617 = vpop.permute.xlu0 %616
    %v618 = vsel %vm59, %v603, %v605
    %v619 = vsel %vm59, %v605, %v607
    %v620 = vsel %vm59, %v607, %v609
    %v621 = vsel %vm59, %v609, %v611
    %v622 = vsel %vm59, %v611, %v613
    %v623 = vsel %vm59, %v613, %v615
    %v624 = vsel %vm59, %v615, %v617
    %v633 = vmax.f32 %v586, %v618
    %v634 = vmax.f32 %v587, %v619
    %v635 = vmax.f32 %v588, %v620
    %v636 = vmax.f32 %v589, %v621
    %v637 = vmax.f32 %v590, %v622
    %v638 = vmax.f32 %v591, %v623
    %v639 = vmax.f32 %v592, %v624
    %v640 = vmax.f32 %v593, %v617
    %v641 = vld [vmem:[%s4] sm:$0xf]
    %v642 = vld [vmem:[%s4 + $0x4] sm:$0xf]
    %v643 = vld [vmem:[%s4 + $0x8] sm:$0xf]
    %v644 = vld [vmem:[%s4 + $0xc] sm:$0xf]
    %v645 = vld [vmem:[%s4 + $0x10] sm:$0xf]
    %v646 = vld [vmem:[%s4 + $0x14] sm:$0xf]
    %v647 = vld [vmem:[%s4 + $0x18] sm:$0xf]
    %v648 = vld [vmem:[%s4 + $0x1c] sm:$0xf]
    %v649 = vld [vmem:[%s4 + $0x20] sm:$0xf]
    %v650 = vld [vmem:[%s4 + $0x24] sm:$0xf]
    %v651 = vld [vmem:[%s4 + $0x28] sm:$0xf]
    %v652 = vld [vmem:[%s4 + $0x2c] sm:$0xf]
    %v653 = vld [vmem:[%s4 + $0x30] sm:$0xf]
    %v654 = vld [vmem:[%s4 + $0x34] sm:$0xf]
    %v655 = vld [vmem:[%s4 + $0x38] sm:$0xf]
    %v656 = vld [vmem:[%s4 + $0x3c] sm:$0xf]
    %v657 = vld [vmem:[%s4 + $0x40] sm:$0xf]
    %v658 = vld [vmem:[%s4 + $0x44] sm:$0xf]
    %v659 = vld [vmem:[%s4 + $0x48] sm:$0xf]
    %v660 = vld [vmem:[%s4 + $0x4c] sm:$0xf]
    %v661 = vld [vmem:[%s4 + $0x50] sm:$0xf]
    %v662 = vld [vmem:[%s4 + $0x54] sm:$0xf]
    %v663 = vld [vmem:[%s4 + $0x58] sm:$0xf]
    %v664 = vld [vmem:[%s4 + $0x5c] sm:$0xf]
    %v665 = vld [vmem:[%s4 + $0x60] sm:$0xf]
    %v666 = vld [vmem:[%s4 + $0x64] sm:$0x7]
    %v667 = vunpack.c.l.bf16 %v641
    %v668 = vunpack.c.l.bf16 %v642
    %v669 = vunpack.c.l.bf16 %v643
    %v670 = vunpack.c.l.bf16 %v644
    %v671 = vunpack.c.l.bf16 %v645
    %v672 = vunpack.c.l.bf16 %v646
    %v673 = vunpack.c.l.bf16 %v647
    %v674 = vunpack.c.l.bf16 %v648
    %v675 = vunpack.c.l.bf16 %v649
    %v676 = vunpack.c.l.bf16 %v650
    %v677 = vunpack.c.l.bf16 %v651
    %v678 = vunpack.c.l.bf16 %v652
    %v679 = vunpack.c.l.bf16 %v653
    %v680 = vunpack.c.l.bf16 %v654
    %v681 = vunpack.c.l.bf16 %v655
    %v682 = vunpack.c.l.bf16 %v656
    %v683 = vunpack.c.l.bf16 %v657
    %v684 = vunpack.c.l.bf16 %v658
    %v685 = vunpack.c.l.bf16 %v659
    %v686 = vunpack.c.l.bf16 %v660
    %v687 = vunpack.c.l.bf16 %v661
    %v688 = vunpack.c.l.bf16 %v662
    %v689 = vunpack.c.l.bf16 %v663
    %v690 = vunpack.c.l.bf16 %v664
    %v691 = vunpack.c.l.bf16 %v665
    %v692 = vunpack.c.l.bf16 %v666
    %vm693 = vcmask 629760
    %v695 = vsel %vm693, %v634, 0
    %v698 = vsel %vm693, %v636, 0
    %v701 = vsel %vm693, %v638, 0
    %v704 = vsel %vm693, %v640, 0
    %vm706 = vcmask 1044480
    %v708 = vsel %vm706, %v692, 0
    %710 = vmatprep.subr.mxu0 0.0
    %711 = vmatpush1.msra.mxu0 %v667
    %712 = vmatprep.subr.mxu0 0.0
    %713 = vmatpush1.msra.mxu0 %v668
    %714 = vmatprep.subr.mxu0 0.0
    %715 = vmatpush1.msra.mxu0 %v669
    %716 = vmatprep.subr.mxu0 0.0
    %717 = vmatpush1.msra.mxu0 %v670
    %718 = vmatprep.subr.mxu0 0.0
    %719 = vmatpush1.msra.mxu0 %v671
    %720 = vmatprep.subr.mxu0 0.0
    %721 = vmatpush1.msra.mxu0 %v672
    %722 = vmatprep.subr.mxu0 0.0
    %723 = vmatpush1.msra.mxu0 %v673
    %724 = vmatprep.subr.mxu0 0.0
    %725 = vmatpush1.msra.mxu0 %v674
    %726 = vmatprep.subr.mxu0 0.0
    %727 = vmatpush1.msra.mxu0 %v675
    %728 = vmatprep.subr.mxu0 0.0
    %729 = vmatpush1.msra.mxu0 %v676
    %730 = vmatprep.subr.mxu0 0.0
    %731 = vmatpush1.msra.mxu0 %v677
    %732 = vmatprep.subr.mxu0 0.0
    %733 = vmatpush1.msra.mxu0 %v678
    %734 = vmatprep.subr.mxu0 0.0
    %735 = vmatpush1.msra.mxu0 %v679
    %736 = vmatprep.subr.mxu0 0.0
    %737 = vmatpush1.msra.mxu0 %v680
    %738 = vmatprep.subr.mxu0 0.0
    %739 = vmatpush1.msra.mxu0 %v681
    %740 = vmatprep.subr.mxu0 0.0
    %741 = vmatpush1.msra.mxu0 %v682
    %742 = vmatprep.subr.mxu0 0.0
    %743 = vmatpush1.msra.mxu0 %v683
    %744 = vmatprep.subr.mxu0 0.0
    %745 = vmatpush1.msra.mxu0 %v684
    %746 = vmatprep.subr.mxu0 0.0
    %747 = vmatpush1.msra.mxu0 %v685
    %748 = vmatprep.subr.mxu0 0.0
    %749 = vmatpush1.msra.mxu0 %v686
    %750 = vmatprep.subr.mxu0 0.0
    %751 = vmatpush1.msra.mxu0 %v687
    %752 = vmatprep.subr.mxu0 0.0
    %753 = vmatpush1.msra.mxu0 %v688
    %754 = vmatprep.subr.mxu0 0.0
    %755 = vmatpush1.msra.mxu0 %v689
    %756 = vmatprep.subr.mxu0 0.0
    %757 = vmatpush1.msra.mxu0 %v690
    %758 = vmatprep.subr.mxu0 0.0
    %759 = vmatpush1.msra.mxu0 %v691
    %760 = vmatprep.subr.mxu0 0.0
    %761 = vmatpush1.msra.mxu0 %v708
    %762 = vmatprep.subr.mxu0 0.0
    %763 = vmatpush1.msra.mxu0 0.0
    %764 = vmatprep.subr.mxu0 0.0
    %765 = vmatpush1.msra.mxu0 0.0
    %766 = vmatprep.subr.mxu0 0.0
    %767 = vmatpush1.msra.mxu0 0.0
    %768 = vmatprep.subr.mxu0 0.0
    %769 = vmatpush1.msra.mxu0 0.0
    %770 = vmatprep.subr.mxu0 0.0
    %771 = vmatpush1.msra.mxu0 0.0
    %772 = vmatprep.subr.mxu0 0.0
    %773 = vmatpush1.msra.mxu0 0.0
    %774 = vmatprep.mubr.f32.mxu0 %v695
    %775 = vmatmul.mubr.f32.gmra.mrb[0].mxu0 %v633
    %v776 = vpop.f32.mrb[0].mxu0
    %v777 = vadd.f32 0.0, %v776
    %v778 = vpop.f32.mrb[0].mxu0
    %779 = vmatprep.mubr.f32.mxu0 %v698
    %780 = vmatmul.mubr.f32.gmra.mrb[0].mxu0 %v635
    %v781 = vpop.f32.mrb[0].mxu0
    %v782 = vadd.f32 0.0, %v781
    %v783 = vpop.f32.mrb[0].mxu0
    %784 = vmatprep.mubr.f32.mxu0 %v701
    %785 = vmatmul.mubr.f32.gmra.mrb[0].mxu0 %v637
    %v786 = vpop.f32.mrb[0].mxu0
    %v787 = vadd.f32 0.0, %v786
    %v788 = vpop.f32.mrb[0].mxu0
    %789 = vmatprep.mubr.f32.mxu0 %v704
    %790 = vmatmul.mubr.f32.gmra.mrb[0].mxu0 %v639
    %v791 = vpop.f32.mrb[0].mxu0
    %v792 = vadd.f32 0.0, %v791
    %v793 = vpop.f32.mrb[0].mxu0
    %794 = vdwg.mxu0
    %vm795 = vcmask 400384
    %796 = vst.msk [vmem:[#allocation2] sm:$0xff] %vm795, %v777
    %797 = vst.msk [vmem:[#allocation2 + $0x8] sm:$0xff] %vm795, %v782
    %798 = vst.msk [vmem:[#allocation4] sm:$0xff] %vm795, %v787
    %799 = vst.msk [vmem:[#allocation4 + $0x8] sm:$0xff] %vm795, %v792
    // Predicated region
    $region22: #{tpu_custom_call.1} parent=1 // pred_check
      _
    $region23: #{tpu_custom_call.1} parent=1 // pred_check_branch
      %801 = sbr.rel (0) target = $region25
    $region24: #{tpu_custom_call.1} parent=1 // pred_region
      %s803 = ssub.s32 256, 256
      %804 = vsyncadd [#allocation3], %s803
      %s805 = sshll.u32 [#allocation2], 4
      %s806 = int_to_ptr.vmem [resolvable:$true] %s805
      %811 = dma.vmem_to_hbm [thread:$0]  %s806, 256, %s5, [#allocation3], 128, 128, 8
    $region25: #{tpu_custom_call.1} parent=1 // pred_fallthru
      _
    // Predicated region
    $region26: #{tpu_custom_call.1} parent=1 // pred_check
      _
    $region27: #{tpu_custom_call.1} parent=1 // pred_check_branch
      %813 = sbr.rel (0) target = $region29
    $region28: #{tpu_custom_call.1} parent=1 // pred_region
      %s815 = ssub.s32 256, 256
      %816 = vsyncadd [#allocation5], %s815
      %s817 = sshll.u32 [#allocation4], 4
      %s818 = int_to_ptr.vmem [resolvable:$true] %s817
      %823 = dma.vmem_to_hbm [thread:$0]  %s818, 256, %s6, [#allocation5], 128, 128, 8
    $region29: #{tpu_custom_call.1} parent=1 // pred_fallthru
      _
    // Predicated region
    $region30: #{tpu_custom_call.1} parent=1 // pred_check
      _
    $region31: #{tpu_custom_call.1} parent=1 // pred_check_branch
      %825 = sbr.rel (0) target = $region33
    $region32: #{tpu_custom_call.1} parent=1 // pred_region
      %826 = dma.done [#allocation3], 256
    $region33: #{tpu_custom_call.1} parent=1 // pred_fallthru
      _
    // Predicated region
    $region34: #{tpu_custom_call.1} parent=1 // pred_check
      _
    $region35: #{tpu_custom_call.1} parent=1 // pred_check_branch
      %828 = sbr.rel (0) target = $region37
    $region36: #{tpu_custom_call.1} parent=1 // pred_region
      %829 = dma.done [#allocation5], 256
    $region37: #{tpu_custom_call.1} parent=1 // pred_fallthru
      _
    %830 = vsyncpa [#allocation3], 1
    %831 = vsyncpa [#allocation5], 1

</llo_original>
